<compile_context>
chip_gen: v7x
topology: tpu7x:2x2x1
jax: 0.10.0
libtpu: 0.0.40
codegen_flags: <defaults>
</compile_context>

<pallas_src>
import jax
import jax.numpy as jnp
from jax.experimental import pallas as pl
from jax.experimental.pallas import tpu as pltpu


def _splitnet_kernel(x_ref, w_ref, b_ref, o_ref):
    # Single fused matmul for all heads: (TB, D) @ (D, out_dim) + (1, out_dim).
    o_ref[...] = (
        jnp.dot(x_ref[...], w_ref[...], preferred_element_type=jnp.float32)
        + b_ref[...]
    ).astype(o_ref.dtype)


def _round_up(x: int, m: int) -> int:
    return ((x + m - 1) // m) * m


def _pick_batch_tile(batch: int, d: int, out_dim: int, itemsize: int) -> int:
    """Byte-budget batch tile (multiple of 8, or the full batch)."""
    # (sublane, lane)-padded per-row VMEM bytes for the streamed x and out tiles.
    d_pad = _round_up(d, 128)
    o_pad = _round_up(out_dim, 128)
    padded_row_bytes = (d_pad + o_pad) * itemsize
    # Double-buffered streamed tiles capped at ~16 MiB (safe on v7x's 64 MiB VMEM).
    vmem_rows = (16 << 20) // (2 * padded_row_bytes)
    # ~4 MiB of real HBM traffic per grid step amortizes the ~0.35 us step cost.
    hbm_rows = (4 << 20) // max((d + out_dim) * itemsize, 1)
    tb = min(vmem_rows, max(hbm_rows, 8), 1 << 15)
    # Keep >= 2 grid steps when the batch can be split, so v7x's 2 TensorCores
    # both get work (extra step is noise on single-TC v5e/v6e).
    if batch >= 16:
        tb = min(tb, _round_up(pl.cdiv(batch, 2), 8))
    tb = max((tb // 8) * 8, 8)
    if tb >= batch:
        return batch  # single full-extent block (always layout-legal)
    return tb


@jax.jit
def splitnet_forward(s, *params):
    """SplitNet forward.

    s:      (B, input_dim)
    params: alternating (w_0, b_0, w_1, b_1, ...) with w_i: (input_dim, d_i),
            b_i: (1, d_i).  Heads are fused into one matmul here (outside the
            kernel) and concatenated along the last axis, matching
            torch.cat([net(s) for net in nets], dim=-1).
    """
    weights = params[0::2]
    biases = params[1::2]

    # Fuse all heads: one weight matrix / bias row (done by XLA, outside kernel).
    w = jnp.concatenate(weights, axis=1)  # (D, out_dim)
    b = jnp.concatenate(biases, axis=1)   # (1, out_dim)

    B, D = s.shape
    out_dim = w.shape[1]
    itemsize = jnp.dtype(s.dtype).itemsize

    tb = _pick_batch_tile(B, D, out_dim, itemsize)
    grid = (pl.cdiv(B, tb),)  # non-divisible B -> padded/masked last block

    # VMEM footprint with (8,128) padding; W/b charged double-buffered too.
    d_pad = _round_up(D, 128)
    o_pad = _round_up(out_dim, 128)
    tb_pad = _round_up(tb, 8)
    footprint = (
        2 * tb_pad * d_pad * itemsize               # x tiles (double buffered)
        + 2 * tb_pad * o_pad * itemsize             # out tiles (double buffered)
        + 2 * _round_up(D, 8) * o_pad * itemsize    # resident W (2 buffers)
        + 2 * 8 * o_pad * itemsize                  # resident b (2 buffers)
    )
    # Never set the scoped limit below the default; keep headroom, stay well
    # under v7x's 64 MiB physical VMEM.
    vmem_limit = int(min(max(footprint + footprint // 2, 32 << 20), 48 << 20))

    return pl.pallas_call(
        _splitnet_kernel,
        out_shape=jax.ShapeDtypeStruct((B, out_dim), s.dtype),
        grid_spec=pltpu.PrefetchScalarGridSpec(
            num_scalar_prefetch=0,
            grid=grid,
            in_specs=[
                pl.BlockSpec((tb, D), lambda i: (i, 0)),        # stream x rows
                pl.BlockSpec((D, out_dim), lambda i: (0, 0)),   # resident W
                pl.BlockSpec((1, out_dim), lambda i: (0, 0)),   # resident b
            ],
            out_specs=pl.BlockSpec((tb, out_dim), lambda i: (i, 0)),
        ),
        compiler_params=pltpu.CompilerParams(
            dimension_semantics=("parallel",),   # lets v7x shard grid steps
            vmem_limit_bytes=vmem_limit,
        ),
    )(s, w, b)


def _ref_forward(s, *params):
    # Pure-JAX reference (mirrors the PyTorch module head-by-head).
    weights = params[0::2]
    biases = params[1::2]
    return jnp.concatenate([s @ w + b for w, b in zip(weights, biases)], axis=-1)


if __name__ == "__main__":
    # Module hyper-parameters (small, consistent with the forward pass).
    input_dim = 32
    output_dim = (8, 16)  # two Linear heads, concatenated -> 24

    key = jax.random.PRNGKey(0)
    k_x, k_w1, k_b1, k_w2, k_b2, k_x2 = jax.random.split(key, 6)

    # Deterministic parameter init (PyTorch Linear default: U(-1/sqrt(D), 1/sqrt(D))).
    bound = 1.0 / jnp.sqrt(jnp.float32(input_dim))
    w1 = jax.random.uniform(k_w1, (input_dim, output_dim[0]), jnp.float32, -bound, bound)
    b1 = jax.random.uniform(k_b1, (1, output_dim[0]), jnp.float32, -bound, bound)
    w2 = jax.random.uniform(k_w2, (input_dim, output_dim[1]), jnp.float32, -bound, bound)
    b2 = jax.random.uniform(k_b2, (1, output_dim[1]), jnp.float32, -bound, bound)

    # Primary small-shape check: batch = 8.
    batch = 8
    s = jax.random.normal(k_x, (batch, input_dim), jnp.float32)
    out = jax.block_until_ready(splitnet_forward(s, w1, b1, w2, b2))
    ref = _ref_forward(s, w1, b1, w2, b2)
    assert out.shape == (batch, sum(output_dim)), out.shape
    assert jnp.allclose(out, ref, atol=1e-5, rtol=1e-5), "mismatch vs reference (B=8)"

    # Non-divisible batch exercises the pl.cdiv grid + masked last block.
    batch2 = 36
    s2 = jax.random.normal(k_x2, (batch2, input_dim), jnp.float32)
    out2 = jax.block_until_ready(splitnet_forward(s2, w1, b1, w2, b2))
    ref2 = _ref_forward(s2, w1, b1, w2, b2)
    assert out2.shape == (batch2, sum(output_dim)), out2.shape
    assert jnp.allclose(out2, ref2, atol=1e-5, rtol=1e-5), "mismatch vs reference (B=36)"

    print("KERNEL_OK")
</pallas_src>

<mosaic_0001>
module attributes {stable_mosaic.version = 11 : i64} {
  func.func @_splitnet_kernel(%arg0: i32, %arg1: memref<8x32xf32, #tpu.memory_space<vmem>>, %arg2: memref<32x24xf32, #tpu.memory_space<vmem>>, %arg3: memref<1x24xf32, #tpu.memory_space<vmem>>, %arg4: memref<8x24xf32, #tpu.memory_space<vmem>>) attributes {dimension_semantics = [#tpu.dimension_semantics<parallel>], iteration_bounds = array<i64: 1>, scalar_prefetch = 0 : i64, scratch_operands = 0 : i64, tpu.core_type = #tpu.core_type<tc>, window_params = [{transform_indices = @transform_0, window_bounds = array<i64: 8, 32>}, {pipeline_mode = #tpu.pipeline_mode<synchronous>, transform_indices = @transform_1, window_bounds = array<i64: 32, 24>}, {pipeline_mode = #tpu.pipeline_mode<synchronous>, transform_indices = @transform_2, window_bounds = array<i64: 1, 24>}, {transform_indices = @transform_3, window_bounds = array<i64: 8, 24>}]} {
    %c0 = arith.constant 0 : index
    %c0_0 = arith.constant 0 : index
    %0 = vector.load %arg1[%c0, %c0_0] : memref<8x32xf32, #tpu.memory_space<vmem>>, vector<8x32xf32>
    %c0_1 = arith.constant 0 : index
    %c0_2 = arith.constant 0 : index
    %1 = vector.load %arg2[%c0_1, %c0_2] : memref<32x24xf32, #tpu.memory_space<vmem>>, vector<32x24xf32>
    %cst = arith.constant dense<0.000000e+00> : vector<8x24xf32>
    %2 = tpu.matmul %0, %1, %cst {dimension_numbers = #tpu.dot_dimension_numbers<[1], [0], [0], [1], [0, 0, 1, 1], [], []>} : vector<8x32xf32>, vector<32x24xf32>, vector<8x24xf32> -> vector<8x24xf32>
    %c0_3 = arith.constant 0 : index
    %c0_4 = arith.constant 0 : index
    %3 = vector.load %arg3[%c0_3, %c0_4] : memref<1x24xf32, #tpu.memory_space<vmem>>, vector<1x24xf32>
    %4 = vector.broadcast %3 : vector<1x24xf32> to vector<8x24xf32>
    %5 = arith.addf %2, %4 : vector<8x24xf32>
    %c0_5 = arith.constant 0 : index
    %c0_6 = arith.constant 0 : index
    %6 = vector.load %arg4[%c0_5, %c0_6] : memref<8x24xf32, #tpu.memory_space<vmem>>, vector<8x24xf32>
    tpu.vector_store %arg4[%c0_5, %c0_6], %5 {strides = array<i32>} : memref<8x24xf32, #tpu.memory_space<vmem>>, vector<8x24xf32>,
    return
  }
  func.func @transform_0(%arg0: i32) -> (i32, i32) {
    %c0_i32 = arith.constant 0 : i32
    %c0_i32_0 = arith.constant 0 : i32
    return %arg0, %c0_i32 : i32, i32
  }
  func.func @transform_1(%arg0: i32) -> (i32, i32) {
    %c0_i32 = arith.constant 0 : i32
    %c0_i32_0 = arith.constant 0 : i32
    %c0_i32_1 = arith.constant 0 : i32
    return %c0_i32, %c0_i32_0 : i32, i32
  }
  func.func @transform_2(%arg0: i32) -> (i32, i32) {
    %c0_i32 = arith.constant 0 : i32
    %c0_i32_0 = arith.constant 0 : i32
    %c0_i32_1 = arith.constant 0 : i32
    return %c0_i32, %c0_i32_0 : i32, i32
  }
  func.func @transform_3(%arg0: i32) -> (i32, i32) {
    %c0_i32 = arith.constant 0 : i32
    %c0_i32_0 = arith.constant 0 : i32
    return %arg0, %c0_i32 : i32, i32
  }
}

</mosaic_0001>

<llo_original>
// kernel: splitnet_forward.1
$region0: #{splitnet_forward.1}
  #allocation0 [shape = 'u32[]', space=smem, size = 0x4, offset = 0x4, fixed_abs, tag = 'smem constant byte address 0x4 - core index']
  #allocation1 [shape = 'u32[144,128]{1,0:T(1,128)}', space=vmem, size = 0x12000, scoped, tag = 'internal scratch']
  %s0 = inlined_call_operand.vmem [shape: f32[8,32], index: 0, kind: input, shape index: {}]
  %s1 = inlined_call_operand.vmem [shape: f32[32,24], index: 1, kind: input, shape index: {}]
  %s2 = inlined_call_operand.vmem [shape: f32[1,24], index: 2, kind: input, shape index: {}]
  %s3 = inlined_call_operand.hbm [shape: f32[8,24], index: 3, kind: output, shape index: {}]
  %s4 = sld [smem:[#allocation0]]
  $region22: #{splitnet_forward.1} parent=0
    _
  %s6 = ssub.s32 1, %s4
  %s7 = scalar_select 0, %s6, %s4
  $region1: #{splitnet_forward.1} parent=0
    #allocation2 [shape = 'u8[4096]{0}', space=vmem, size = 0x1000, scoped, tag = 'output window, operand 0, single buffered']
    #allocation3 [shape = 's32[1]{0}', space=sflag, size = 0x4, scoped, tag = 'scoped memory for splitnet_forward.1']
    %8 = vsyncpa [#allocation3], 0
    // Predicated region
    $region2: #{splitnet_forward.1} parent=1 // pred_check
      _
    $region3: #{splitnet_forward.1} parent=1 // pred_check_branch
      %10 = sbr.rel (0) target = $region5
    $region4: #{splitnet_forward.1} parent=1 // pred_region
      _
    $region5: #{splitnet_forward.1} parent=1 // pred_fallthru
      _
    // Predicated region
    $region6: #{splitnet_forward.1} parent=1 // pred_check
      _
    $region7: #{splitnet_forward.1} parent=1 // pred_check_branch
      %12 = sbr.rel (0) target = $region9
    $region8: #{splitnet_forward.1} parent=1 // pred_region
      _
    $region9: #{splitnet_forward.1} parent=1 // pred_fallthru
      _
    // Predicated region
    $region10: #{splitnet_forward.1} parent=1 // pred_check
      _
    $region11: #{splitnet_forward.1} parent=1 // pred_check_branch
      %14 = sbr.rel (0) target = $region13
    $region12: #{splitnet_forward.1} parent=1 // pred_region
      _
    $region13: #{splitnet_forward.1} parent=1 // pred_fallthru
      _
    %v15 = vld [vmem:[%s0] sm:$0xff]
    %v16 = vld [vmem:[%s1] sm:$0xff]
    %v17 = vld [vmem:[%s1 + $0x8] sm:$0xff]
    %v18 = vld [vmem:[%s1 + $0x10] sm:$0xff]
    %v19 = vld [vmem:[%s1 + $0x18] sm:$0xff]
    %v20 = vld [vmem:[%s2] sm:$0x1]
    %v22 = vlaneseq
    %v23 = vshrl.u32 %v22, 7
    %v24 = vsub.s32 0, %v23
    %v25 = vrot.slane %v20, %v24
    %vm27 = vcmask 261120
    %v29 = vsel %vm27, %v15, 0
    %31 = vmatprep.subr.mxu0 0.0
    %32 = vmatpush1.msra.mxu0 %v16
    %33 = vmatprep.subr.mxu0 0.0
    %34 = vmatpush1.msra.mxu0 %v17
    %35 = vmatprep.subr.mxu0 0.0
    %36 = vmatpush1.msra.mxu0 %v18
    %37 = vmatprep.subr.mxu0 0.0
    %38 = vmatpush1.msra.mxu0 %v19
    %39 = vmatprep.subr.mxu0 0.0
    %40 = vmatpush1.msra.mxu0 0.0
    %41 = vmatprep.subr.mxu0 0.0
    %42 = vmatpush1.msra.mxu0 0.0
    %43 = vmatprep.subr.mxu0 0.0
    %44 = vmatpush1.msra.mxu0 0.0
    %45 = vmatprep.subr.mxu0 0.0
    %46 = vmatpush1.msra.mxu0 0.0
    %47 = vmatprep.subr.mxu0 0.0
    %48 = vmatpush1.msra.mxu0 0.0
    %49 = vmatprep.subr.mxu0 0.0
    %50 = vmatpush1.msra.mxu0 0.0
    %51 = vmatprep.subr.mxu0 0.0
    %52 = vmatpush1.msra.mxu0 0.0
    %53 = vmatprep.subr.mxu0 0.0
    %54 = vmatpush1.msra.mxu0 0.0
    %55 = vmatprep.subr.mxu0 0.0
    %56 = vmatpush1.msra.mxu0 0.0
    %57 = vmatprep.subr.mxu0 0.0
    %58 = vmatpush1.msra.mxu0 0.0
    %59 = vmatprep.subr.mxu0 0.0
    %60 = vmatpush1.msra.mxu0 0.0
    %61 = vmatprep.subr.mxu0 0.0
    %62 = vmatpush1.msra.mxu0 0.0
    %63 = vmatprep.subr.mxu0 0.0
    %64 = vmatpush1.msra.mxu0 0.0
    %65 = vmatprep.subr.mxu0 0.0
    %66 = vmatpush1.msra.mxu0 0.0
    %67 = vmatprep.subr.mxu0 0.0
    %68 = vmatpush1.msra.mxu0 0.0
    %69 = vmatprep.subr.mxu0 0.0
    %70 = vmatpush1.msra.mxu0 0.0
    %71 = vmatprep.subr.mxu0 0.0
    %72 = vmatpush1.msra.mxu0 0.0
    %73 = vmatprep.subr.mxu0 0.0
    %74 = vmatpush1.msra.mxu0 0.0
    %75 = vmatprep.subr.mxu0 0.0
    %76 = vmatpush1.msra.mxu0 0.0
    %77 = vmatprep.subr.mxu0 0.0
    %78 = vmatpush1.msra.mxu0 0.0
    %79 = vmatprep.subr.mxu0 0.0
    %80 = vmatpush1.msra.mxu0 0.0
    %81 = vmatprep.subr.mxu0 0.0
    %82 = vmatpush1.msra.mxu0 0.0
    %83 = vmatprep.subr.mxu0 0.0
    %84 = vmatpush1.msra.mxu0 0.0
    %85 = vmatprep.subr.mxu0 0.0
    %86 = vmatpush1.msra.mxu0 0.0
    %87 = vmatprep.subr.mxu0 0.0
    %88 = vmatpush1.msra.mxu0 0.0
    %89 = vmatprep.subr.mxu0 0.0
    %90 = vmatpush1.msra.mxu0 0.0
    %91 = vmatprep.subr.mxu0 0.0
    %92 = vmatpush1.msra.mxu0 0.0
    %93 = vmatprep.subr.mxu0 0.0
    %94 = vmatpush1.msra.mxu0 0.0
    %95 = vmatprep.mubr.f32.mxu0 0.0
    %96 = vmatmul.mubr.f32.gmra.mrb[0].mxu0 %v29
    %v97 = vpop.f32.mrb[0].mxu0
    %v98 = vadd.f32 %v25, %v97
    %v99 = vpop.f32.mrb[0].mxu0
    %100 = vdwg.mxu0
    %vm101 = vcmask 195584
    %102 = vst.msk [vmem:[#allocation2] sm:$0xff] %vm101, %v98
    // Predicated region
    $region14: #{splitnet_forward.1} parent=1 // pred_check
      _
    $region15: #{splitnet_forward.1} parent=1 // pred_check_branch
      %104 = sbr.rel (0) target = $region17
    $region16: #{splitnet_forward.1} parent=1 // pred_region
      %s106 = ssub.s32 128, 128
      %107 = vsyncadd [#allocation3], %s106
      %s109 = sshll.u32 [#allocation2], 4
      %s110 = int_to_ptr.vmem [resolvable:$true] %s109
      %112 = dma.vmem_to_hbm [thread:$0]  %s110, 128, %s3, [#allocation3]
    $region17: #{splitnet_forward.1} parent=1 // pred_fallthru
      _
    // Predicated region
    $region18: #{splitnet_forward.1} parent=1 // pred_check
      _
    $region19: #{splitnet_forward.1} parent=1 // pred_check_branch
      %114 = sbr.rel (0) target = $region21
    $region20: #{splitnet_forward.1} parent=1 // pred_region
      %115 = dma.done [#allocation3], 128
    $region21: #{splitnet_forward.1} parent=1 // pred_fallthru
      _
    %116 = vsyncpa [#allocation3], 1

</llo_original>
